<compile_context>
chip_gen: v7x
topology: tpu7x:2x2x1
jax: 0.10.0
libtpu: 0.0.40
codegen_flags: <defaults>
</compile_context>

<pallas_src>
import jax
import jax.numpy as jnp
from jax.experimental import pallas as pl
from jax.experimental.pallas import tpu as pltpu


_MASK_FILL = -1.0e12                 # plain Python float, only used in wrappers
_VMEM_BUDGET = 40 * 1024 * 1024      # conservative vs v7x's 64 MiB physical VMEM
_VMEM_LIMIT = 48 * 1024 * 1024


# ---------------------------------------------------------------------------
# Long-sequence path: grid (B, ceil(L/TL)), fused per-batch weight in scratch.
# ---------------------------------------------------------------------------
def _score_fold_kernel(bp_ref, hidc_ref, num_ref, w2_ref, w3_ref, ws_ref,
                       out_ref, w23_ref):
    li = pl.program_id(1)

    # Build the fused weight once per batch row and reuse it across seq tiles:
    #   W23 = W2 + diag(hid) * W3   (exact; accumulated in f32, stored bf16)
    @pl.when(li == 0)
    def _():
        xh_col = hidc_ref[0].astype(jnp.float32)                    # (H, 1)
        w23_ref[...] = (w2_ref[...].astype(jnp.float32)
                        + xh_col * w3_ref[...].astype(jnp.float32)
                        ).astype(jnp.bfloat16)

    # num tile arrives in producer dtype; cast to bf16 here (hidden under DMA).
    xn = num_ref[0].astype(jnp.bfloat16)                            # (TL, H)
    e = jnp.tanh(
        jnp.dot(xn, w23_ref[...], preferred_element_type=jnp.float32)
        + bp_ref[0])                                                # (TL, H) f32

    # score = e @ w_score.T  -> VPU multiply + lane reduce, lane-dense store.
    s = jnp.sum(e * ws_ref[...], axis=-1)                           # (TL,)
    out_ref[...] = s[None, None, :]


def _seq_tile(L, H):
    # VMEM model: 2 bf16 (H,H) weights double-buffered + bf16 (H,H) scratch,
    # plus ~14 B per (seq_row, H) element for the streamed num tile + temps.
    weights = 10 * H * H
    per_row = 14 * H
    cap = (_VMEM_BUDGET - weights) // per_row
    cap = max(128, min(512, (cap // 128) * 128))
    return L if L <= cap else cap


def _score_long(hidden, num, w2T, w3T, bprime, ws, seq_tile):
    B, L, H = num.shape
    TL = _seq_tile(L, H) if seq_tile is None else seq_tile
    TL = L if TL >= L else TL
    hidc = jnp.transpose(hidden.astype(jnp.float32), (0, 2, 1))     # (B, H, 1)

    out = pl.pallas_call(
        _score_fold_kernel,
        out_shape=jax.ShapeDtypeStruct((B, 1, L), jnp.float32),
        grid=(B, pl.cdiv(L, TL)),
        in_specs=[
            pl.BlockSpec((1, 1, H), lambda bi, li: (bi, 0, 0)),     # b' per batch
            pl.BlockSpec((1, H, 1), lambda bi, li: (bi, 0, 0)),     # hidden column
            pl.BlockSpec((1, TL, H), lambda bi, li: (bi, li, 0)),   # num seq tile
            pl.BlockSpec((H, H), lambda bi, li: (0, 0)),            # W2^T resident
            pl.BlockSpec((H, H), lambda bi, li: (0, 0)),            # W3^T resident
            pl.BlockSpec((1, H), lambda bi, li: (0, 0)),            # w_score
        ],
        out_specs=pl.BlockSpec((1, 1, TL), lambda bi, li: (bi, 0, li)),
        scratch_shapes=[pltpu.VMEM((H, H), jnp.bfloat16)],          # fused W23
        compiler_params=pltpu.CompilerParams(
            dimension_semantics=("parallel", "arbitrary"),
            vmem_limit_bytes=_VMEM_LIMIT),
    )(bprime, hidc, num, w2T, w3T, ws)
    return out.reshape(B, L)


# ---------------------------------------------------------------------------
# Small-L path (L < 128): flatten to (B*L, H) rows, 1-D grid of row tiles.
# ---------------------------------------------------------------------------
def _score_rows_kernel(hid_ref, num_ref, w1_ref, w2_ref, w3_ref, b_ref,
                       ws_ref, out_ref):
    xh = hid_ref[...].astype(jnp.float32)                           # (TM, H)
    xn = num_ref[...].astype(jnp.float32)                           # (TM, H)
    xp = (xh * xn).astype(jnp.bfloat16)       # product in f32 (v5e VPU is f32)
    e = jnp.tanh(
        jnp.dot(xh.astype(jnp.bfloat16), w1_ref[...],
                preferred_element_type=jnp.float32)
        + jnp.dot(xn.astype(jnp.bfloat16), w2_ref[...],
                  preferred_element_type=jnp.float32)
        + jnp.dot(xp, w3_ref[...], preferred_element_type=jnp.float32)
        + b_ref[...])                                               # (TM, H) f32
    out_ref[...] = jnp.sum(e * ws_ref[...], axis=-1)[None, :]       # (1, TM)


def _row_tile(R, H):
    weights = 12 * H * H           # three bf16 (H,H) weights, double-buffered
    per_row = 24 * H               # hid+num streams + temps
    cap = (_VMEM_BUDGET - weights) // per_row
    cap = max(128, min(512, (cap // 128) * 128))
    return R if R <= cap else cap


def _score_small(hidden, num, w1T, w2T, w3T, b, ws, row_tile):
    B, L, H = num.shape
    R = B * L
    TM = _row_tile(R, H) if row_tile is None else row_tile
    TM = R if TM >= R else TM
    hid_flat = jnp.broadcast_to(hidden, (B, L, H)).reshape(R, H)
    num_flat = num.reshape(R, H)

    out = pl.pallas_call(
        _score_rows_kernel,
        out_shape=jax.ShapeDtypeStruct((1, R), jnp.float32),
        grid=(pl.cdiv(R, TM),),
        in_specs=[
            pl.BlockSpec((TM, H), lambda mi: (mi, 0)),              # hidden rows
            pl.BlockSpec((TM, H), lambda mi: (mi, 0)),              # num rows
            pl.BlockSpec((H, H), lambda mi: (0, 0)),                # W1^T
            pl.BlockSpec((H, H), lambda mi: (0, 0)),                # W2^T
            pl.BlockSpec((H, H), lambda mi: (0, 0)),                # W3^T
            pl.BlockSpec((1, H), lambda mi: (0, 0)),                # bias
            pl.BlockSpec((1, H), lambda mi: (0, 0)),                # w_score
        ],
        out_specs=pl.BlockSpec((1, TM), lambda mi: (0, mi)),
        compiler_params=pltpu.CompilerParams(
            dimension_semantics=("parallel",),
            vmem_limit_bytes=_VMEM_LIMIT),
    )(hid_flat, num_flat, w1T, w2T, w3T, b, ws)
    return out.reshape(B, L)


# ---------------------------------------------------------------------------
# Public wrapper
# ---------------------------------------------------------------------------
def score_forward(hidden, num_embeddings, w_attn, b_attn, w_score,
                  num_mask=None, *, seq_tile=None, row_tile=None):
    """hidden: (B,1,H), num_embeddings: (B,L,H), w_attn: (H,3H), b_attn: (H,),
       w_score: (1,H), num_mask: (B,L) or None  ->  (B,L) float32."""
    B, L, H = num_embeddings.shape
    assert hidden.shape == (B, 1, H)
    assert w_attn.shape == (H, 3 * H)

    # Transposed weight slices; MXU consumes them as bf16 (fold accumulates f32).
    w1T = w_attn[:, :H].T
    w2T = w_attn[:, H:2 * H].T.astype(jnp.bfloat16)
    w3T = w_attn[:, 2 * H:].T.astype(jnp.bfloat16)
    ws = w_score.reshape(1, H).astype(jnp.float32)

    if L < 128:
        # Typical tree-decoder regime: few quantities per problem.
        b = b_attn.reshape(1, H).astype(jnp.float32)
        score = _score_small(hidden, num_embeddings, w1T.astype(jnp.bfloat16),
                             w2T, w3T, b, ws, row_tile)
    else:
        # b' = b + hidden @ W1  (exact, tiny (B,H) f32 matmul in the wrapper).
        bprime = (b_attn[None, :]
                  + hidden[:, 0, :].astype(jnp.float32)
                  @ w1T.astype(jnp.float32)).reshape(B, 1, H)
        score = _score_long(hidden, num_embeddings, w2T, w3T,
                            bprime.astype(jnp.float32), ws, seq_tile)

    if num_mask is not None:
        # Applied on the tiny (B, L) output instead of streaming a mask tile.
        score = jnp.where(num_mask.astype(bool), _MASK_FILL, score)
    return score


def score_ref(hidden, num_embeddings, w_attn, b_attn, w_score, num_mask=None):
    """Pure-JAX f32 reference, mirrors the PyTorch forward."""
    B, L, H = num_embeddings.shape
    hid = jnp.broadcast_to(hidden, (B, L, H))
    energy_in = jnp.concatenate(
        [hid, num_embeddings, hid * num_embeddings], axis=2).reshape(-1, 3 * H)
    e = jnp.tanh(energy_in @ w_attn.T + b_attn)
    s = (e @ w_score.T).reshape(B, L)
    if num_mask is not None:
        s = jnp.where(num_mask.astype(bool), _MASK_FILL, s)
    return s


if __name__ == "__main__":
    key = jax.random.PRNGKey(0)
    ks = jax.random.split(key, 8)
    H = 32

    bound_a = 1.0 / (3.0 * H) ** 0.5
    w_attn = jax.random.uniform(ks[0], (H, 3 * H), jnp.float32, -bound_a, bound_a)
    b_attn = jax.random.uniform(ks[1], (H,), jnp.float32, -bound_a, bound_a)
    bound_s = 1.0 / H ** 0.5
    w_score = jax.random.uniform(ks[2], (1, H), jnp.float32, -bound_s, bound_s)

    # ---- small-L path (typical tree-decoder shapes) ----------------------
    B, L = 2, 8
    hidden = jax.random.normal(ks[3], (B, 1, H), jnp.float32)
    num_emb = jax.random.normal(ks[4], (B, L, H), jnp.float32)
    num_mask = (jax.random.uniform(ks[5], (B, L)) > 0.7).astype(jnp.int32)

    out_m = jax.block_until_ready(
        score_forward(hidden, num_emb, w_attn, b_attn, w_score, num_mask))
    out_u = jax.block_until_ready(
        score_forward(hidden, num_emb, w_attn, b_attn, w_score))
    ref_m = score_ref(hidden, num_emb, w_attn, b_attn, w_score, num_mask)
    ref_u = score_ref(hidden, num_emb, w_attn, b_attn, w_score)
    assert out_m.shape == (B, L) and out_u.shape == (B, L)
    # bf16 MXU inputs with f32 accumulation -> slightly relaxed tolerance.
    assert jnp.allclose(out_u, ref_u, atol=2e-2, rtol=2e-2), (out_u, ref_u)
    assert jnp.allclose(out_m, ref_m, atol=2e-2, rtol=2e-2), (out_m, ref_m)

    # ---- long-L path (per-batch fused-weight kernel) ----------------------
    # Force a small seq tile so the fused-weight scratch carry across li tiles
    # (pl.when(li == 0) init + reuse) is exercised.
    L2 = 256
    hidden2 = jax.random.normal(ks[6], (B, 1, H), jnp.float32)
    num_emb2 = jax.random.normal(ks[7], (B, L2, H), jnp.float32)
    out2 = jax.block_until_ready(
        score_forward(hidden2, num_emb2, w_attn, b_attn, w_score, seq_tile=128))
    ref2 = score_ref(hidden2, num_emb2, w_attn, b_attn, w_score)
    assert out2.shape == (B, L2)
    assert jnp.allclose(out2, ref2, atol=2e-2, rtol=2e-2), (out2, ref2)

    print("KERNEL_OK")
</pallas_src>

<mosaic_0001>
module attributes {stable_mosaic.version = 11 : i64} {
  func.func @_score_rows_kernel(%arg0: i32, %arg1: memref<16x32xf32, #tpu.memory_space<vmem>>, %arg2: memref<16x32xf32, #tpu.memory_space<vmem>>, %arg3: memref<32x32xbf16, #tpu.memory_space<vmem>>, %arg4: memref<32x32xbf16, #tpu.memory_space<vmem>>, %arg5: memref<32x32xbf16, #tpu.memory_space<vmem>>, %arg6: memref<1x32xf32, #tpu.memory_space<vmem>>, %arg7: memref<1x32xf32, #tpu.memory_space<vmem>>, %arg8: memref<1x16xf32, #tpu.memory_space<vmem>>) attributes {dimension_semantics = [#tpu.dimension_semantics<parallel>], iteration_bounds = array<i64: 1>, scalar_prefetch = 0 : i64, scratch_operands = 0 : i64, tpu.core_type = #tpu.core_type<tc>, window_params = [{transform_indices = @transform_0, window_bounds = array<i64: 16, 32>}, {transform_indices = @transform_1, window_bounds = array<i64: 16, 32>}, {pipeline_mode = #tpu.pipeline_mode<synchronous>, transform_indices = @transform_2, window_bounds = array<i64: 32, 32>}, {pipeline_mode = #tpu.pipeline_mode<synchronous>, transform_indices = @transform_3, window_bounds = array<i64: 32, 32>}, {pipeline_mode = #tpu.pipeline_mode<synchronous>, transform_indices = @transform_4, window_bounds = array<i64: 32, 32>}, {pipeline_mode = #tpu.pipeline_mode<synchronous>, transform_indices = @transform_5, window_bounds = array<i64: 1, 32>}, {pipeline_mode = #tpu.pipeline_mode<synchronous>, transform_indices = @transform_6, window_bounds = array<i64: 1, 32>}, {transform_indices = @transform_7, window_bounds = array<i64: 1, 16>}]} {
    %c0 = arith.constant 0 : index
    %c0_0 = arith.constant 0 : index
    %0 = vector.load %arg1[%c0, %c0_0] : memref<16x32xf32, #tpu.memory_space<vmem>>, vector<16x32xf32>
    %c0_1 = arith.constant 0 : index
    %c0_2 = arith.constant 0 : index
    %1 = vector.load %arg2[%c0_1, %c0_2] : memref<16x32xf32, #tpu.memory_space<vmem>>, vector<16x32xf32>
    %2 = arith.mulf %0, %1 : vector<16x32xf32>
    %3 = arith.truncf %2 : vector<16x32xf32> to vector<16x32xbf16>
    %4 = arith.truncf %0 : vector<16x32xf32> to vector<16x32xbf16>
    %c0_3 = arith.constant 0 : index
    %c0_4 = arith.constant 0 : index
    %5 = vector.load %arg3[%c0_3, %c0_4] : memref<32x32xbf16, #tpu.memory_space<vmem>>, vector<32x32xbf16>
    %cst = arith.constant dense<0.000000e+00> : vector<16x32xf32>
    %6 = tpu.matmul %4, %5, %cst {dimension_numbers = #tpu.dot_dimension_numbers<[1], [0], [0], [1], [0, 0, 1, 1], [], []>} : vector<16x32xbf16>, vector<32x32xbf16>, vector<16x32xf32> -> vector<16x32xf32>
    %7 = arith.truncf %1 : vector<16x32xf32> to vector<16x32xbf16>
    %c0_5 = arith.constant 0 : index
    %c0_6 = arith.constant 0 : index
    %8 = vector.load %arg4[%c0_5, %c0_6] : memref<32x32xbf16, #tpu.memory_space<vmem>>, vector<32x32xbf16>
    %cst_7 = arith.constant dense<0.000000e+00> : vector<16x32xf32>
    %9 = tpu.matmul %7, %8, %cst_7 {dimension_numbers = #tpu.dot_dimension_numbers<[1], [0], [0], [1], [0, 0, 1, 1], [], []>} : vector<16x32xbf16>, vector<32x32xbf16>, vector<16x32xf32> -> vector<16x32xf32>
    %10 = arith.addf %6, %9 : vector<16x32xf32>
    %c0_8 = arith.constant 0 : index
    %c0_9 = arith.constant 0 : index
    %11 = vector.load %arg5[%c0_8, %c0_9] : memref<32x32xbf16, #tpu.memory_space<vmem>>, vector<32x32xbf16>
    %cst_10 = arith.constant dense<0.000000e+00> : vector<16x32xf32>
    %12 = tpu.matmul %3, %11, %cst_10 {dimension_numbers = #tpu.dot_dimension_numbers<[1], [0], [0], [1], [0, 0, 1, 1], [], []>} : vector<16x32xbf16>, vector<32x32xbf16>, vector<16x32xf32> -> vector<16x32xf32>
    %13 = arith.addf %10, %12 : vector<16x32xf32>
    %c0_11 = arith.constant 0 : index
    %c0_12 = arith.constant 0 : index
    %14 = vector.load %arg6[%c0_11, %c0_12] : memref<1x32xf32, #tpu.memory_space<vmem>>, vector<1x32xf32>
    %15 = vector.broadcast %14 : vector<1x32xf32> to vector<16x32xf32>
    %16 = arith.addf %13, %15 : vector<16x32xf32>
    %17 = math.tanh %16 : vector<16x32xf32>
    %c0_13 = arith.constant 0 : index
    %c0_14 = arith.constant 0 : index
    %18 = vector.load %arg7[%c0_13, %c0_14] : memref<1x32xf32, #tpu.memory_space<vmem>>, vector<1x32xf32>
    %19 = vector.broadcast %18 : vector<1x32xf32> to vector<16x32xf32>
    %20 = arith.mulf %17, %19 : vector<16x32xf32>
    %cst_15 = arith.constant dense<0.000000e+00> : vector<16xf32>
    %21 = vector.multi_reduction <add>, %20, %cst_15 [1] : vector<16x32xf32> to vector<16xf32>
    %22 = vector.shape_cast %21 : vector<16xf32> to vector<1x16xf32>
    %c0_16 = arith.constant 0 : index
    %c0_17 = arith.constant 0 : index
    %23 = vector.load %arg8[%c0_16, %c0_17] : memref<1x16xf32, #tpu.memory_space<vmem>>, vector<1x16xf32>
    tpu.vector_store %arg8[%c0_16, %c0_17], %22 {strides = array<i32>} : memref<1x16xf32, #tpu.memory_space<vmem>>, vector<1x16xf32>,
    return
  }
  func.func @transform_0(%arg0: i32) -> (i32, i32) {
    %c0_i32 = arith.constant 0 : i32
    %c0_i32_0 = arith.constant 0 : i32
    return %arg0, %c0_i32 : i32, i32
  }
  func.func @transform_1(%arg0: i32) -> (i32, i32) {
    %c0_i32 = arith.constant 0 : i32
    %c0_i32_0 = arith.constant 0 : i32
    return %arg0, %c0_i32 : i32, i32
  }
  func.func @transform_2(%arg0: i32) -> (i32, i32) {
    %c0_i32 = arith.constant 0 : i32
    %c0_i32_0 = arith.constant 0 : i32
    %c0_i32_1 = arith.constant 0 : i32
    return %c0_i32, %c0_i32_0 : i32, i32
  }
  func.func @transform_3(%arg0: i32) -> (i32, i32) {
    %c0_i32 = arith.constant 0 : i32
    %c0_i32_0 = arith.constant 0 : i32
    %c0_i32_1 = arith.constant 0 : i32
    return %c0_i32, %c0_i32_0 : i32, i32
  }
  func.func @transform_4(%arg0: i32) -> (i32, i32) {
    %c0_i32 = arith.constant 0 : i32
    %c0_i32_0 = arith.constant 0 : i32
    %c0_i32_1 = arith.constant 0 : i32
    return %c0_i32, %c0_i32_0 : i32, i32
  }
  func.func @transform_5(%arg0: i32) -> (i32, i32) {
    %c0_i32 = arith.constant 0 : i32
    %c0_i32_0 = arith.constant 0 : i32
    %c0_i32_1 = arith.constant 0 : i32
    return %c0_i32, %c0_i32_0 : i32, i32
  }
  func.func @transform_6(%arg0: i32) -> (i32, i32) {
    %c0_i32 = arith.constant 0 : i32
    %c0_i32_0 = arith.constant 0 : i32
    %c0_i32_1 = arith.constant 0 : i32
    return %c0_i32, %c0_i32_0 : i32, i32
  }
  func.func @transform_7(%arg0: i32) -> (i32, i32) {
    %c0_i32 = arith.constant 0 : i32
    %c0_i32_0 = arith.constant 0 : i32
    return %c0_i32, %arg0 : i32, i32
  }
}

</mosaic_0001>

<llo_original>
// kernel: tpu_custom_call.1
$region0: #{tpu_custom_call.1}
  #allocation0 [shape = 'u32[]', space=smem, size = 0x4, offset = 0x4, fixed_abs, tag = 'smem constant byte address 0x4 - core index']
  #allocation1 [shape = 'u32[144,128]{1,0:T(1,128)}', space=vmem, size = 0x12000, scoped, tag = 'internal scratch']
  %s0 = inlined_call_operand.hbm [shape: f32[16,32], index: 0, kind: input, shape index: {}]
  %s1 = inlined_call_operand.hbm [shape: f32[16,32], index: 1, kind: input, shape index: {}]
  %s2 = inlined_call_operand.hbm [shape: bf16[32,32], index: 2, kind: input, shape index: {}]
  %s3 = inlined_call_operand.hbm [shape: bf16[32,32], index: 3, kind: input, shape index: {}]
  %s4 = inlined_call_operand.hbm [shape: bf16[32,32], index: 4, kind: input, shape index: {}]
  %s5 = inlined_call_operand.vmem [shape: f32[1,32], index: 5, kind: input, shape index: {}]
  %s6 = inlined_call_operand.vmem [shape: f32[1,32], index: 6, kind: input, shape index: {}]
  %s7 = inlined_call_operand.hbm [shape: f32[1,16], index: 7, kind: output, shape index: {}]
  %s8 = sld [smem:[#allocation0]]
  $region58: #{tpu_custom_call.1} parent=0
    _
  %s10 = ssub.s32 1, %s8
  %s11 = scalar_select 0, %s10, %s8
  $region1: #{tpu_custom_call.1} parent=0
    #allocation2 [shape = 'u8[8192]{0}', space=vmem, size = 0x2000, scoped, tag = 'input window, operand 0, single buffered']
    #allocation3 [shape = 's32[1]{0}', space=sflag, size = 0x4, scoped, tag = 'scoped memory for tpu_custom_call.1']
    #allocation4 [shape = 's32[1]{0}', space=sflag, size = 0x4, scoped, tag = 'scoped memory for tpu_custom_call.1']
    #allocation5 [shape = 'u8[8192]{0}', space=vmem, size = 0x2000, scoped, tag = 'input window, operand 1, single buffered']
    #allocation6 [shape = 's32[1]{0}', space=sflag, size = 0x4, scoped, tag = 'scoped memory for tpu_custom_call.1']
    #allocation7 [shape = 'u8[8192]{0}', space=vmem, size = 0x2000, scoped, tag = 'input window, operand 2, single buffered']
    #allocation8 [shape = 'u8[8192]{0}', space=vmem, size = 0x2000, scoped, tag = 'input window, operand 3, single buffered']
    #allocation9 [shape = 's32[1]{0}', space=sflag, size = 0x4, scoped, tag = 'scoped memory for tpu_custom_call.1']
    #allocation10 [shape = 'u8[8192]{0}', space=vmem, size = 0x2000, scoped, tag = 'input window, operand 4, single buffered']
    #allocation11 [shape = 'u8[512]{0}', space=vmem, size = 0x400, scoped, tag = 'output window, operand 0, single buffered']
    %12 = vsyncpa [#allocation3], 0
    %13 = vsyncpa [#allocation6], 0
    %14 = vsyncpa [#allocation9], 0
    %15 = vsyncpa [#allocation4], 0
    // Predicated region
    $region2: #{tpu_custom_call.1} parent=1 // pred_check
      _
    $region3: #{tpu_custom_call.1} parent=1 // pred_check_branch
      %17 = sbr.rel (0) target = $region5
    $region4: #{tpu_custom_call.1} parent=1 // pred_region
      %s19 = ssub.s32 256, 256
      %20 = vsyncadd [#allocation3], %s19
      %s21 = sshll.u32 [#allocation2], 4
      %s22 = int_to_ptr.vmem [resolvable:$true] %s21
      %27 = dma.hbm_to_vmem [thread:$0]  %s0, 256, %s22, [#allocation3], 128, 128, 8
    $region5: #{tpu_custom_call.1} parent=1 // pred_fallthru
      _
    // Predicated region
    $region6: #{tpu_custom_call.1} parent=1 // pred_check
      _
    $region7: #{tpu_custom_call.1} parent=1 // pred_check_branch
      %29 = sbr.rel (0) target = $region9
    $region8: #{tpu_custom_call.1} parent=1 // pred_region
      %s31 = ssub.s32 256, 256
      %32 = vsyncadd [#allocation6], %s31
      %s33 = sshll.u32 [#allocation5], 4
      %s34 = int_to_ptr.vmem [resolvable:$true] %s33
      %39 = dma.hbm_to_vmem [thread:$0]  %s1, 256, %s34, [#allocation6], 128, 128, 8
    $region9: #{tpu_custom_call.1} parent=1 // pred_fallthru
      _
    // Predicated region
    $region10: #{tpu_custom_call.1} parent=1 // pred_check
      _
    $region11: #{tpu_custom_call.1} parent=1 // pred_check_branch
      %41 = sbr.rel (0) target = $region13
    $region12: #{tpu_custom_call.1} parent=1 // pred_region
      %s43 = ssub.s32 256, 256
      %44 = vsyncadd [#allocation6], %s43
      %s45 = sshll.u32 [#allocation7], 4
      %s46 = int_to_ptr.vmem [resolvable:$true] %s45
      %51 = dma.hbm_to_vmem [thread:$0]  %s2, 256, %s46, [#allocation6], 64, 64, 4
    $region13: #{tpu_custom_call.1} parent=1 // pred_fallthru
      _
    // Predicated region
    $region14: #{tpu_custom_call.1} parent=1 // pred_check
      _
    $region15: #{tpu_custom_call.1} parent=1 // pred_check_branch
      %53 = sbr.rel (0) target = $region17
    $region16: #{tpu_custom_call.1} parent=1 // pred_region
      %s55 = ssub.s32 256, 256
      %56 = vsyncadd [#allocation9], %s55
      %s57 = sshll.u32 [#allocation8], 4
      %s58 = int_to_ptr.vmem [resolvable:$true] %s57
      %63 = dma.hbm_to_vmem [thread:$0]  %s3, 256, %s58, [#allocation9], 64, 64, 4
    $region17: #{tpu_custom_call.1} parent=1 // pred_fallthru
      _
    // Predicated region
    $region18: #{tpu_custom_call.1} parent=1 // pred_check
      _
    $region19: #{tpu_custom_call.1} parent=1 // pred_check_branch
      %65 = sbr.rel (0) target = $region21
    $region20: #{tpu_custom_call.1} parent=1 // pred_region
      %s67 = ssub.s32 256, 256
      %68 = vsyncadd [#allocation9], %s67
      %s69 = sshll.u32 [#allocation10], 4
      %s70 = int_to_ptr.vmem [resolvable:$true] %s69
      %75 = dma.hbm_to_vmem [thread:$0]  %s4, 256, %s70, [#allocation9], 64, 64, 4
    $region21: #{tpu_custom_call.1} parent=1 // pred_fallthru
      _
    // Predicated region
    $region22: #{tpu_custom_call.1} parent=1 // pred_check
      _
    $region23: #{tpu_custom_call.1} parent=1 // pred_check_branch
      %77 = sbr.rel (0) target = $region25
    $region24: #{tpu_custom_call.1} parent=1 // pred_region
      _
    $region25: #{tpu_custom_call.1} parent=1 // pred_fallthru
      _
    // Predicated region
    $region26: #{tpu_custom_call.1} parent=1 // pred_check
      _
    $region27: #{tpu_custom_call.1} parent=1 // pred_check_branch
      %79 = sbr.rel (0) target = $region29
    $region28: #{tpu_custom_call.1} parent=1 // pred_region
      _
    $region29: #{tpu_custom_call.1} parent=1 // pred_fallthru
      _
    // Predicated region
    $region30: #{tpu_custom_call.1} parent=1 // pred_check
      _
    $region31: #{tpu_custom_call.1} parent=1 // pred_check_branch
      %81 = sbr.rel (0) target = $region33
    $region32: #{tpu_custom_call.1} parent=1 // pred_region
      %82 = dma.done [#allocation3], 256
    $region33: #{tpu_custom_call.1} parent=1 // pred_fallthru
      _
    // Predicated region
    $region34: #{tpu_custom_call.1} parent=1 // pred_check
      _
    $region35: #{tpu_custom_call.1} parent=1 // pred_check_branch
      %84 = sbr.rel (0) target = $region37
    $region36: #{tpu_custom_call.1} parent=1 // pred_region
      %85 = dma.done [#allocation6], 256
    $region37: #{tpu_custom_call.1} parent=1 // pred_fallthru
      _
    // Predicated region
    $region38: #{tpu_custom_call.1} parent=1 // pred_check
      _
    $region39: #{tpu_custom_call.1} parent=1 // pred_check_branch
      %87 = sbr.rel (0) target = $region41
    $region40: #{tpu_custom_call.1} parent=1 // pred_region
      %88 = dma.done [#allocation6], 256
    $region41: #{tpu_custom_call.1} parent=1 // pred_fallthru
      _
    // Predicated region
    $region42: #{tpu_custom_call.1} parent=1 // pred_check
      _
    $region43: #{tpu_custom_call.1} parent=1 // pred_check_branch
      %90 = sbr.rel (0) target = $region45
    $region44: #{tpu_custom_call.1} parent=1 // pred_region
      %91 = dma.done [#allocation9], 256
    $region45: #{tpu_custom_call.1} parent=1 // pred_fallthru
      _
    // Predicated region
    $region46: #{tpu_custom_call.1} parent=1 // pred_check
      _
    $region47: #{tpu_custom_call.1} parent=1 // pred_check_branch
      %93 = sbr.rel (0) target = $region49
    $region48: #{tpu_custom_call.1} parent=1 // pred_region
      %94 = dma.done [#allocation9], 256
    $region49: #{tpu_custom_call.1} parent=1 // pred_fallthru
      _
    %v96 = vld [vmem:[#allocation2] sm:$0xff]
    %v97 = vld [vmem:[#allocation2 + $0x8] sm:$0xff]
    %v98 = vld [vmem:[#allocation5] sm:$0xff]
    %v99 = vld [vmem:[#allocation5 + $0x8] sm:$0xff]
    %v100 = vmul.f32 %v96, %v98
    %v101 = vmul.f32 %v97, %v99
    %v102 = vpack.c.bf16 %v101, %v100
    %v103 = vpack.c.bf16 %v97, %v96
    %v104 = vld [vmem:[#allocation7] sm:$0xf]
    %v105 = vld [vmem:[#allocation7 + $0x4] sm:$0xf]
    %v106 = vld [vmem:[#allocation7 + $0x8] sm:$0xf]
    %v107 = vld [vmem:[#allocation7 + $0xc] sm:$0xf]
    %v108 = vpack.c.bf16 %v99, %v98
    %v109 = vld [vmem:[#allocation8] sm:$0xf]
    %v110 = vld [vmem:[#allocation8 + $0x4] sm:$0xf]
    %v111 = vld [vmem:[#allocation8 + $0x8] sm:$0xf]
    %v112 = vld [vmem:[#allocation8 + $0xc] sm:$0xf]
    %v117 = vunpack.c.l.b16 %v109
    %v118 = vunpack.c.l.b16 %v110
    %v119 = vunpack.c.l.b16 %v111
    %v120 = vunpack.c.l.b16 %v112
    %v121 = vpack.c.b16 %v118, %v117
    %v122 = vpack.c.b16 %v120, %v119
    %vm125 = vcmask 261120
    %v127 = vsel %vm125, %v108, 0
    %129 = vmatprep.subr.bf16.mxu0 0
    %130 = vmatpush1.bf16.msra.mxu0 %v121
    %131 = vmatprep.subr.bf16.mxu0 0
    %132 = vmatpush1.bf16.msra.mxu0 %v122
    %133 = vmatprep.subr.bf16.mxu0 0
    %134 = vmatpush1.bf16.msra.mxu0 0
    %135 = vmatprep.subr.bf16.mxu0 0
    %136 = vmatpush1.bf16.msra.mxu0 0
    %137 = vmatprep.subr.bf16.mxu0 0
    %138 = vmatpush1.bf16.msra.mxu0 0
    %139 = vmatprep.subr.bf16.mxu0 0
    %140 = vmatpush1.bf16.msra.mxu0 0
    %141 = vmatprep.subr.bf16.mxu0 0
    %142 = vmatpush1.bf16.msra.mxu0 0
    %143 = vmatprep.subr.bf16.mxu0 0
    %144 = vmatpush1.bf16.msra.mxu0 0
    %145 = vmatprep.subr.bf16.mxu0 0
    %146 = vmatpush1.bf16.msra.mxu0 0
    %147 = vmatprep.subr.bf16.mxu0 0
    %148 = vmatpush1.bf16.msra.mxu0 0
    %149 = vmatprep.subr.bf16.mxu0 0
    %150 = vmatpush1.bf16.msra.mxu0 0
    %151 = vmatprep.subr.bf16.mxu0 0
    %152 = vmatpush1.bf16.msra.mxu0 0
    %153 = vmatprep.subr.bf16.mxu0 0
    %154 = vmatpush1.bf16.msra.mxu0 0
    %155 = vmatprep.subr.bf16.mxu0 0
    %156 = vmatpush1.bf16.msra.mxu0 0
    %157 = vmatprep.subr.bf16.mxu0 0
    %158 = vmatpush1.bf16.msra.mxu0 0
    %159 = vmatprep.subr.bf16.mxu0 0
    %160 = vmatpush1.bf16.msra.mxu0 0
    %161 = vmatprep.mubr.bf16.mxu0 0
    %162 = vmatmul.mubr.bf16.gmra.mrb[0].mxu0 %v127
    %v163 = vpop.f32.mrb[0].mxu0
    %v164 = vadd.f32 0.0, %v163
    %v165 = vpop.f32.mrb[0].mxu0
    %v166 = vpop.f32.mrb[0].mxu0
    %v167 = vadd.f32 0.0, %v166
    %v168 = vpop.f32.mrb[0].mxu0
    %169 = vdwg.mxu0
    %v174 = vunpack.c.l.b16 %v104
    %v175 = vunpack.c.l.b16 %v105
    %v176 = vunpack.c.l.b16 %v106
    %v177 = vunpack.c.l.b16 %v107
    %v178 = vpack.c.b16 %v175, %v174
    %v179 = vpack.c.b16 %v177, %v176
    %v183 = vsel %vm125, %v103, 0
    %185 = vmatprep.subr.bf16.mxu0 0
    %186 = vmatpush1.bf16.msra.mxu0 %v178
    %187 = vmatprep.subr.bf16.mxu0 0
    %188 = vmatpush1.bf16.msra.mxu0 %v179
    %189 = vmatprep.subr.bf16.mxu0 0
    %190 = vmatpush1.bf16.msra.mxu0 0
    %191 = vmatprep.subr.bf16.mxu0 0
    %192 = vmatpush1.bf16.msra.mxu0 0
    %193 = vmatprep.subr.bf16.mxu0 0
    %194 = vmatpush1.bf16.msra.mxu0 0
    %195 = vmatprep.subr.bf16.mxu0 0
    %196 = vmatpush1.bf16.msra.mxu0 0
    %197 = vmatprep.subr.bf16.mxu0 0
    %198 = vmatpush1.bf16.msra.mxu0 0
    %199 = vmatprep.subr.bf16.mxu0 0
    %200 = vmatpush1.bf16.msra.mxu0 0
    %201 = vmatprep.subr.bf16.mxu0 0
    %202 = vmatpush1.bf16.msra.mxu0 0
    %203 = vmatprep.subr.bf16.mxu0 0
    %204 = vmatpush1.bf16.msra.mxu0 0
    %205 = vmatprep.subr.bf16.mxu0 0
    %206 = vmatpush1.bf16.msra.mxu0 0
    %207 = vmatprep.subr.bf16.mxu0 0
    %208 = vmatpush1.bf16.msra.mxu0 0
    %209 = vmatprep.subr.bf16.mxu0 0
    %210 = vmatpush1.bf16.msra.mxu0 0
    %211 = vmatprep.subr.bf16.mxu0 0
    %212 = vmatpush1.bf16.msra.mxu0 0
    %213 = vmatprep.subr.bf16.mxu0 0
    %214 = vmatpush1.bf16.msra.mxu0 0
    %215 = vmatprep.subr.bf16.mxu0 0
    %216 = vmatpush1.bf16.msra.mxu0 0
    %217 = vmatprep.mubr.bf16.mxu0 0
    %218 = vmatmul.mubr.bf16.gmra.mrb[0].mxu0 %v183
    %v219 = vpop.f32.mrb[0].mxu0
    %v220 = vadd.f32 %v164, %v219
    %v221 = vpop.f32.mrb[0].mxu0
    %v222 = vpop.f32.mrb[0].mxu0
    %v223 = vadd.f32 %v167, %v222
    %v224 = vpop.f32.mrb[0].mxu0
    %225 = vdwg.mxu0
    %v226 = vld [vmem:[#allocation10] sm:$0xf]
    %v227 = vld [vmem:[#allocation10 + $0x4] sm:$0xf]
    %v228 = vld [vmem:[#allocation10 + $0x8] sm:$0xf]
    %v229 = vld [vmem:[#allocation10 + $0xc] sm:$0xf]
    %v234 = vunpack.c.l.b16 %v226
    %v235 = vunpack.c.l.b16 %v227
    %v236 = vunpack.c.l.b16 %v228
    %v237 = vunpack.c.l.b16 %v229
    %v238 = vpack.c.b16 %v235, %v234
    %v239 = vpack.c.b16 %v237, %v236
    %v243 = vsel %vm125, %v102, 0
    %245 = vmatprep.subr.bf16.mxu0 0
    %246 = vmatpush1.bf16.msra.mxu0 %v238
    %247 = vmatprep.subr.bf16.mxu0 0
    %248 = vmatpush1.bf16.msra.mxu0 %v239
    %249 = vmatprep.subr.bf16.mxu0 0
    %250 = vmatpush1.bf16.msra.mxu0 0
    %251 = vmatprep.subr.bf16.mxu0 0
    %252 = vmatpush1.bf16.msra.mxu0 0
    %253 = vmatprep.subr.bf16.mxu0 0
    %254 = vmatpush1.bf16.msra.mxu0 0
    %255 = vmatprep.subr.bf16.mxu0 0
    %256 = vmatpush1.bf16.msra.mxu0 0
    %257 = vmatprep.subr.bf16.mxu0 0
    %258 = vmatpush1.bf16.msra.mxu0 0
    %259 = vmatprep.subr.bf16.mxu0 0
    %260 = vmatpush1.bf16.msra.mxu0 0
    %261 = vmatprep.subr.bf16.mxu0 0
    %262 = vmatpush1.bf16.msra.mxu0 0
    %263 = vmatprep.subr.bf16.mxu0 0
    %264 = vmatpush1.bf16.msra.mxu0 0
    %265 = vmatprep.subr.bf16.mxu0 0
    %266 = vmatpush1.bf16.msra.mxu0 0
    %267 = vmatprep.subr.bf16.mxu0 0
    %268 = vmatpush1.bf16.msra.mxu0 0
    %269 = vmatprep.subr.bf16.mxu0 0
    %270 = vmatpush1.bf16.msra.mxu0 0
    %271 = vmatprep.subr.bf16.mxu0 0
    %272 = vmatpush1.bf16.msra.mxu0 0
    %273 = vmatprep.subr.bf16.mxu0 0
    %274 = vmatpush1.bf16.msra.mxu0 0
    %275 = vmatprep.subr.bf16.mxu0 0
    %276 = vmatpush1.bf16.msra.mxu0 0
    %277 = vmatprep.mubr.bf16.mxu0 0
    %278 = vmatmul.mubr.bf16.gmra.mrb[0].mxu0 %v243
    %v279 = vpop.f32.mrb[0].mxu0
    %v280 = vadd.f32 0.0, %v279
    %v281 = vpop.f32.mrb[0].mxu0
    %v282 = vpop.f32.mrb[0].mxu0
    %v283 = vadd.f32 0.0, %v282
    %v284 = vpop.f32.mrb[0].mxu0
    %285 = vdwg.mxu0
    %v286 = vadd.f32 %v220, %v280
    %v287 = vadd.f32 %v223, %v283
    %v288 = vld [vmem:[%s5] sm:$0x1]
    %v290 = vlaneseq
    %v291 = vshrl.u32 %v290, 7
    %v292 = vsub.s32 0, %v291
    %v293 = vrot.slane %v288, %v292
    %v295 = vadd.f32 %v286, %v293
    %v296 = vadd.f32 %v287, %v293
    %v297 = vtanh.pop %v295
    %v298 = vtanh.pop %v296
    %v299 = vld [vmem:[%s6] sm:$0x1]
    %v301 = vlaneseq
    %v302 = vshrl.u32 %v301, 7
    %v303 = vsub.s32 0, %v302
    %v304 = vrot.slane %v299, %v303
    %v306 = vmul.f32 %v297, %v304
    %v307 = vmul.f32 %v298, %v304
    %v308 = vsel %vm125, %v306, 0.0
    %309 = vadd.xlane.f32.xlu0 %v308
    %v310 = vpop.xlane.xlu0 %309
    %v311 = vsel %vm125, %v307, 0.0
    %312 = vadd.xlane.f32.xlu0 %v311
    %v313 = vpop.xlane.xlu0 %312
    %v316 = vlaneseq
    %v317 = vand.u32 %v316, 127
    %v318 = vlaneseq
    %v319 = vshrl.u32 %v318, 7
    %v320 = vsub.s32 %v317, %v319
    %v321 = vrot.slane %v310, %v320
    %v322 = vadd.s32 %v317, 4294967288
    %v323 = vlaneseq
    %v324 = vshrl.u32 %v323, 7
    %v325 = vsub.s32 %v322, %v324
    %v326 = vrot.slane %v313, %v325
    %vm327 = vcmask 130112
    %v328 = vsel %vm327, %v326, %v321
    %vm330 = vcmask 122880
    %331 = vst.msk [vmem:[#allocation11] sm:$0x1] %vm330, %v328
    // Predicated region
    $region50: #{tpu_custom_call.1} parent=1 // pred_check
      _
    $region51: #{tpu_custom_call.1} parent=1 // pred_check_branch
      %333 = sbr.rel (0) target = $region53
    $region52: #{tpu_custom_call.1} parent=1 // pred_region
      %s335 = ssub.s32 16, 16
      %336 = vsyncadd [#allocation4], %s335
      %s338 = sshll.u32 [#allocation11], 4
      %s339 = int_to_ptr.vmem [resolvable:$true] %s338
      %341 = dma.vmem_to_hbm [thread:$0]  %s339, 16, %s7, [#allocation4]
    $region53: #{tpu_custom_call.1} parent=1 // pred_fallthru
      _
    // Predicated region
    $region54: #{tpu_custom_call.1} parent=1 // pred_check
      _
    $region55: #{tpu_custom_call.1} parent=1 // pred_check_branch
      %343 = sbr.rel (0) target = $region57
    $region56: #{tpu_custom_call.1} parent=1 // pred_region
      %344 = dma.done [#allocation4], 16
    $region57: #{tpu_custom_call.1} parent=1 // pred_fallthru
      _
    %345 = vsyncpa [#allocation3], 1
    %346 = vsyncpa [#allocation6], 1
    %347 = vsyncpa [#allocation9], 1
    %348 = vsyncpa [#allocation4], 1

</llo_original>
